<compile_context>
chip_gen: v5e
topology: v5e:2x2
jax: 0.10.0
libtpu: 0.0.40
codegen_flags: <defaults>
</compile_context>

<pallas_src>
import math

import numpy as np
import jax
import jax.numpy as jnp
from jax.experimental import pallas as pl
from jax.experimental.pallas import tpu as pltpu


# ----------------------------------------------------------------------------
# Small helpers
# ----------------------------------------------------------------------------
def _round_up(x, m):
    return ((x + m - 1) // m) * m


def _lsr32(v, k):
    """Logical right shift of an int32 array (arith shift + mask of sign bits)."""
    return (v >> k) & jnp.int32((1 << (32 - k)) - 1)


def _mix32(v):
    """murmur3-style finalizer on int32 (wrapping multiplies)."""
    v = v ^ _lsr32(v, 16)
    v = v * jnp.int32(-2048144789)   # 0x85EBCA6B
    v = v ^ _lsr32(v, 13)
    v = v * jnp.int32(-1028477387)   # 0xC2B2AE35
    v = v ^ _lsr32(v, 16)
    return v


# ----------------------------------------------------------------------------
# Time embedding glue (tiny, plain JAX)
# ----------------------------------------------------------------------------
def time_embedding(timesteps, emb_size):
    half = emb_size // 2
    freqs = jnp.exp(
        -math.log(10000.0) * jnp.arange(half, dtype=jnp.float32) / float(half)
    )
    temp = timesteps.astype(jnp.float32)[:, None] * freqs[None, :]
    te = jnp.concatenate([jnp.cos(temp), jnp.sin(temp)], axis=-1)
    if emb_size % 2:
        te = jnp.concatenate([te, jnp.zeros_like(te[:, :1])], axis=-1)
    return te


# ----------------------------------------------------------------------------
# Parameter init (deterministic, mirrors Denoise.init_weights distributions)
# ----------------------------------------------------------------------------
def init_params(key, in_dims, out_dims, emb_size):
    def linear(key, d_in, d_out):
        kw, kb = jax.random.split(key)
        std = float(np.sqrt(2.0 / (d_in + d_out)))
        w = jax.random.normal(kw, (d_in, d_out), jnp.float32) * std  # [in, out]
        b = jax.random.normal(kb, (1, d_out), jnp.float32) * 0.001
        return w, b

    in_dims_temp = [in_dims[0] + emb_size] + list(in_dims[1:])
    out_dims_temp = list(out_dims)

    keys = jax.random.split(key, 1 + (len(in_dims_temp) - 1) + (len(out_dims_temp) - 1))
    ki = iter(keys)

    emb_w, emb_b = linear(next(ki), emb_size, emb_size)
    in_layers = [linear(next(ki), a, b) for a, b in zip(in_dims_temp[:-1], in_dims_temp[1:])]
    out_layers = [linear(next(ki), a, b) for a, b in zip(out_dims_temp[:-1], out_dims_temp[1:])]
    return {"emb": (emb_w, emb_b), "in": in_layers, "out": out_layers}


# ----------------------------------------------------------------------------
# Pallas kernel + forward builder
# ----------------------------------------------------------------------------
def build_denoise_forward(in_dims, out_dims, emb_size, B, *, norm=False,
                          mess_dropout=True, dropout_p=0.5,
                          compute_dtype=jnp.bfloat16, tb_max=512):
    D_in = int(in_dims[0])
    E = int(emb_size)
    in_dims_temp = [D_in + E] + list(in_dims[1:])
    out_dims_temp = list(out_dims)
    n_in_layers = len(in_dims_temp) - 1
    n_rest_in = n_in_layers - 1
    n_out_layers = len(out_dims_temp) - 1
    out_dim = out_dims_temp[-1]
    out_pad = _round_up(out_dim, 128)          # lane-dense store

    # Batch tiling: multiple of 8 rows, as big as possible (single step for toy B).
    TB = min(_round_up(B, 8), _round_up(tb_max, 8))
    n_tiles = pl.cdiv(B, TB)
    B_pad = n_tiles * TB

    cd = compute_dtype
    keep_thresh = min(int(round(dropout_p * (1 << 31))), (1 << 31) - 1)
    drop_scale = 1.0 / (1.0 - dropout_p) if dropout_p < 1.0 else 0.0

    def kernel(*refs):
        out_ref = refs[-1]
        it = iter(refs[:-1])
        seed_ref = next(it)
        x_ref = next(it)
        temb_ref = next(it)
        we_ref = next(it); be_ref = next(it)
        w0x_ref = next(it); w0e_ref = next(it); b0_ref = next(it)
        rest_in = [(next(it), next(it)) for _ in range(n_rest_in)]
        outs = [(next(it), next(it)) for _ in range(n_out_layers)]

        f32 = jnp.float32

        # emb = Linear(time_emb)   (MXU with f32 accumulation, bias in f32)
        emb = jnp.dot(temb_ref[...], we_ref[...], preferred_element_type=f32) + be_ref[...]

        # x epilogue (normalize / dropout) stays in f32 on the VPU.
        xf = x_ref[...].astype(f32)

        if norm:  # F.normalize(x, dim=-1, eps=1e-12)
            nrm = jnp.sqrt(jnp.sum(xf * xf, axis=-1, keepdims=True))
            xf = xf / jnp.maximum(nrm, 1e-12)

        if mess_dropout and dropout_p > 0.0:
            # Counter-based PRNG: hash(global_row, col, seed) -> 31-bit uniform,
            # compared against an integer threshold.  Reproducible across TB.
            row = (jax.lax.broadcasted_iota(jnp.int32, xf.shape, 0)
                   + pl.program_id(0) * TB)
            col = jax.lax.broadcasted_iota(jnp.int32, xf.shape, 1)
            v = (row * jnp.int32(-1640531535)        # 0x9E3779B1
                 + col * jnp.int32(668265263)        # 0x27D4EB2F
                 + seed_ref[0])
            v = _mix32(v)
            keep = _lsr32(v, 1) >= jnp.int32(keep_thresh)   # P(keep) = 1 - p
            xf = jnp.where(keep, xf * drop_scale, 0.0)

        # bf16 operands into the MXU, f32 accumulation.
        x_mm = xf.astype(cd)
        emb_mm = emb.astype(cd)

        # first in-layer: concat([x, emb]) @ W0 == x @ W0[:D] + emb @ W0[D:]
        h = jnp.dot(x_mm, w0x_ref[...], preferred_element_type=f32)
        h = h + jnp.dot(emb_mm, w0e_ref[...], preferred_element_type=f32)
        h = jnp.tanh(h + b0_ref[...])

        for w_ref, b_ref in rest_in:
            h = jnp.tanh(
                jnp.dot(h.astype(cd), w_ref[...], preferred_element_type=f32) + b_ref[...]
            )

        for i, (w_ref, b_ref) in enumerate(outs):
            h = jnp.dot(h.astype(cd), w_ref[...], preferred_element_type=f32) + b_ref[...]
            if i != n_out_layers - 1:
                h = jnp.tanh(h)

        out_ref[...] = h.astype(out_ref.dtype)

    def full(shape):
        return pl.BlockSpec(shape, lambda i: (0, 0))

    in_specs = [
        pl.BlockSpec(memory_space=pltpu.MemorySpace.SMEM),   # seed (1,)
        pl.BlockSpec((TB, D_in), lambda i: (i, 0)),          # x tile
        pl.BlockSpec((TB, E), lambda i: (i, 0)),             # time_emb tile
        full((E, E)), full((1, E)),                          # emb layer
        full((D_in, in_dims_temp[1])),                       # W0 (x part)
        full((E, in_dims_temp[1])),                          # W0 (emb part)
        full((1, in_dims_temp[1])),                          # b0
    ]
    for k in range(1, n_in_layers):
        in_specs += [full((in_dims_temp[k], in_dims_temp[k + 1])),
                     full((1, in_dims_temp[k + 1]))]
    for k in range(n_out_layers):
        n_out = out_pad if k == n_out_layers - 1 else out_dims_temp[k + 1]
        in_specs += [full((out_dims_temp[k], n_out)), full((1, n_out))]

    out_specs = pl.BlockSpec((TB, out_pad), lambda i: (i, 0))

    # --- cost estimate (advisory, helps XLA schedule around the custom call) --
    mm_flops = 2 * B_pad * (E * E + D_in * in_dims_temp[1] + E * in_dims_temp[1])
    for k in range(1, n_in_layers):
        mm_flops += 2 * B_pad * in_dims_temp[k] * in_dims_temp[k + 1]
    for k in range(n_out_layers):
        mm_flops += 2 * B_pad * out_dims_temp[k] * out_dims_temp[k + 1]
    tanh_elems = B_pad * (sum(in_dims_temp[1:]) + sum(out_dims_temp[1:-1]))
    bytes_w = 0
    bytes_w += (E * E + D_in * in_dims_temp[1] + E * in_dims_temp[1]) * 2
    for k in range(1, n_in_layers):
        bytes_w += in_dims_temp[k] * in_dims_temp[k + 1] * 2
    for k in range(n_out_layers):
        bytes_w += out_dims_temp[k] * out_dims_temp[k + 1] * 2
    bytes_io = B_pad * (D_in + E) * 2 + B_pad * out_pad * 4
    cost = pl.CostEstimate(flops=int(mm_flops),
                           transcendentals=int(tanh_elems),
                           bytes_accessed=int(bytes_w + bytes_io))

    call = pl.pallas_call(
        kernel,
        grid=(n_tiles,),
        in_specs=in_specs,
        out_specs=out_specs,
        out_shape=jax.ShapeDtypeStruct((B_pad, out_pad), jnp.float32),
        compiler_params=pltpu.CompilerParams(
            dimension_semantics=("parallel",)),   # batch axis -> both TCs on v7x
        cost_estimate=cost,
    )

    def _pad_rows(a):
        if a.shape[0] == B_pad:
            return a
        return jnp.pad(a, ((0, B_pad - a.shape[0]), (0, 0)))

    def forward(params, x, timesteps, seed=0):
        temb = time_embedding(timesteps, E)
        we, be = params["emb"]
        w0, b0 = params["in"][0]
        w0x, w0e = w0[:D_in, :], w0[D_in:, :]

        args = [
            jnp.asarray([seed], jnp.int32),
            _pad_rows(x).astype(cd),
            _pad_rows(temb).astype(cd),
            we.astype(cd), be.astype(jnp.float32),
            w0x.astype(cd), w0e.astype(cd), b0.astype(jnp.float32),
        ]
        for w, b in params["in"][1:]:
            args += [w.astype(cd), b.astype(jnp.float32)]
        n_out = len(params["out"])
        for i, (w, b) in enumerate(params["out"]):
            if i == n_out - 1 and out_pad != out_dim:   # lane-dense output pad
                w = jnp.pad(w, ((0, 0), (0, out_pad - out_dim)))
                b = jnp.pad(b, ((0, 0), (0, out_pad - out_dim)))
            args += [w.astype(cd), b.astype(jnp.float32)]

        y = call(*args)
        return y[:x.shape[0], :out_dim]

    return forward


# ----------------------------------------------------------------------------
# Pure-JAX reference (dropout off) used only for a sanity check
# ----------------------------------------------------------------------------
def reference_forward(params, x, timesteps, emb_size, norm=False):
    temb = time_embedding(timesteps, emb_size)
    we, be = params["emb"]
    emb = temb @ we + be
    if norm:
        x = x / jnp.maximum(jnp.sqrt(jnp.sum(x * x, axis=-1, keepdims=True)), 1e-12)
    h = jnp.concatenate([x, emb], axis=-1)
    for w, b in params["in"]:
        h = jnp.tanh(h @ w + b)
    n_out = len(params["out"])
    for i, (w, b) in enumerate(params["out"]):
        h = h @ w + b
        if i != n_out - 1:
            h = jnp.tanh(h)
    return h


if __name__ == "__main__":
    # Small, module-consistent shapes: in_dims=[64,32], out_dims=[32,64], emb=16.
    in_dims = [64, 32]
    out_dims = [32, 64]
    emb_size = 16
    B = 16

    key = jax.random.PRNGKey(0)
    kp, kx, kt = jax.random.split(key, 3)
    params = init_params(kp, in_dims, out_dims, emb_size)
    x = jax.random.normal(kx, (B, in_dims[0]), jnp.float32)
    timesteps = jax.random.randint(kt, (B,), 0, 1000, jnp.int32)

    # 1) Accuracy check: f32 compute, dropout off, vs pure-JAX reference.
    #    (Loose tolerance covers MXU default-precision f32 matmul passes.)
    fwd_f32 = build_denoise_forward(in_dims, out_dims, emb_size, B,
                                    norm=False, mess_dropout=False,
                                    compute_dtype=jnp.float32)
    out_f32 = fwd_f32(params, x, timesteps)
    ref = reference_forward(params, x, timesteps, emb_size, norm=False)
    np.testing.assert_allclose(np.asarray(out_f32), np.asarray(ref),
                               atol=2e-2, rtol=2e-2)

    # 2) Main training-mode run: bf16 MXU operands, fused dropout (p=0.5).
    fwd = build_denoise_forward(in_dims, out_dims, emb_size, B,
                                norm=False, mess_dropout=True, dropout_p=0.5,
                                compute_dtype=jnp.bfloat16)
    out = fwd(params, x, timesteps, seed=0)
    out = jax.block_until_ready(out)
    assert out.shape == (B, out_dims[-1])
    assert bool(jnp.all(jnp.isfinite(out)))
    print("KERNEL_OK")
</pallas_src>

<mosaic_0001>
module attributes {stable_mosaic.version = 11 : i64} {
  func.func @kernel(%arg0: i32, %arg1: memref<1xi32, #tpu.memory_space<smem>>, %arg2: memref<16x64xf32, #tpu.memory_space<vmem>>, %arg3: memref<16x16xf32, #tpu.memory_space<vmem>>, %arg4: memref<16x16xf32, #tpu.memory_space<vmem>>, %arg5: memref<1x16xf32, #tpu.memory_space<vmem>>, %arg6: memref<64x32xf32, #tpu.memory_space<vmem>>, %arg7: memref<16x32xf32, #tpu.memory_space<vmem>>, %arg8: memref<1x32xf32, #tpu.memory_space<vmem>>, %arg9: memref<32x128xf32, #tpu.memory_space<vmem>>, %arg10: memref<1x128xf32, #tpu.memory_space<vmem>>, %arg11: memref<16x128xf32, #tpu.memory_space<vmem>>) attributes {dimension_semantics = [#tpu.dimension_semantics<parallel>], iteration_bounds = array<i64: 1>, scalar_prefetch = 0 : i64, scratch_operands = 0 : i64, tpu.core_type = #tpu.core_type<tc>, window_params = [{transform_indices = @transform_0, window_bounds = array<i64: 1>}, {transform_indices = @transform_1, window_bounds = array<i64: 16, 64>}, {transform_indices = @transform_2, window_bounds = array<i64: 16, 16>}, {pipeline_mode = #tpu.pipeline_mode<synchronous>, transform_indices = @transform_3, window_bounds = array<i64: 16, 16>}, {pipeline_mode = #tpu.pipeline_mode<synchronous>, transform_indices = @transform_4, window_bounds = array<i64: 1, 16>}, {pipeline_mode = #tpu.pipeline_mode<synchronous>, transform_indices = @transform_5, window_bounds = array<i64: 64, 32>}, {pipeline_mode = #tpu.pipeline_mode<synchronous>, transform_indices = @transform_6, window_bounds = array<i64: 16, 32>}, {pipeline_mode = #tpu.pipeline_mode<synchronous>, transform_indices = @transform_7, window_bounds = array<i64: 1, 32>}, {pipeline_mode = #tpu.pipeline_mode<synchronous>, transform_indices = @transform_8, window_bounds = array<i64: 32, 128>}, {pipeline_mode = #tpu.pipeline_mode<synchronous>, transform_indices = @transform_9, window_bounds = array<i64: 1, 128>}, {transform_indices = @transform_10, window_bounds = array<i64: 16, 128>}]} {
    %c0 = arith.constant 0 : index
    %c0_0 = arith.constant 0 : index
    %0 = vector.load %arg3[%c0, %c0_0] : memref<16x16xf32, #tpu.memory_space<vmem>>, vector<16x16xf32>
    %c0_1 = arith.constant 0 : index
    %c0_2 = arith.constant 0 : index
    %1 = vector.load %arg4[%c0_1, %c0_2] : memref<16x16xf32, #tpu.memory_space<vmem>>, vector<16x16xf32>
    %cst = arith.constant dense<0.000000e+00> : vector<16x16xf32>
    %2 = tpu.matmul %0, %1, %cst {dimension_numbers = #tpu.dot_dimension_numbers<[1], [0], [0], [1], [0, 0, 1, 1], [], []>} : vector<16x16xf32>, vector<16x16xf32>, vector<16x16xf32> -> vector<16x16xf32>
    %c0_3 = arith.constant 0 : index
    %c0_4 = arith.constant 0 : index
    %3 = vector.load %arg5[%c0_3, %c0_4] : memref<1x16xf32, #tpu.memory_space<vmem>>, vector<1x16xf32>
    %4 = vector.broadcast %3 : vector<1x16xf32> to vector<16x16xf32>
    %5 = arith.addf %2, %4 : vector<16x16xf32>
    %c0_5 = arith.constant 0 : index
    %c0_6 = arith.constant 0 : index
    %6 = vector.load %arg2[%c0_5, %c0_6] : memref<16x64xf32, #tpu.memory_space<vmem>>, vector<16x64xf32>
    %c0_7 = arith.constant 0 : index
    %c0_8 = arith.constant 0 : index
    %7 = vector.load %arg6[%c0_7, %c0_8] : memref<64x32xf32, #tpu.memory_space<vmem>>, vector<64x32xf32>
    %cst_9 = arith.constant dense<0.000000e+00> : vector<16x32xf32>
    %8 = tpu.matmul %6, %7, %cst_9 {dimension_numbers = #tpu.dot_dimension_numbers<[1], [0], [0], [1], [0, 0, 1, 1], [], []>} : vector<16x64xf32>, vector<64x32xf32>, vector<16x32xf32> -> vector<16x32xf32>
    %c0_10 = arith.constant 0 : index
    %c0_11 = arith.constant 0 : index
    %9 = vector.load %arg7[%c0_10, %c0_11] : memref<16x32xf32, #tpu.memory_space<vmem>>, vector<16x32xf32>
    %cst_12 = arith.constant dense<0.000000e+00> : vector<16x32xf32>
    %10 = tpu.matmul %5, %9, %cst_12 {dimension_numbers = #tpu.dot_dimension_numbers<[1], [0], [0], [1], [0, 0, 1, 1], [], []>} : vector<16x16xf32>, vector<16x32xf32>, vector<16x32xf32> -> vector<16x32xf32>
    %11 = arith.addf %8, %10 : vector<16x32xf32>
    %c0_13 = arith.constant 0 : index
    %c0_14 = arith.constant 0 : index
    %12 = vector.load %arg8[%c0_13, %c0_14] : memref<1x32xf32, #tpu.memory_space<vmem>>, vector<1x32xf32>
    %13 = vector.broadcast %12 : vector<1x32xf32> to vector<16x32xf32>
    %14 = arith.addf %11, %13 : vector<16x32xf32>
    %15 = math.tanh %14 : vector<16x32xf32>
    %c0_15 = arith.constant 0 : index
    %c0_16 = arith.constant 0 : index
    %16 = vector.load %arg9[%c0_15, %c0_16] : memref<32x128xf32, #tpu.memory_space<vmem>>, vector<32x128xf32>
    %cst_17 = arith.constant dense<0.000000e+00> : vector<16x128xf32>
    %17 = tpu.matmul %15, %16, %cst_17 {dimension_numbers = #tpu.dot_dimension_numbers<[1], [0], [0], [1], [0, 0, 1, 1], [], []>} : vector<16x32xf32>, vector<32x128xf32>, vector<16x128xf32> -> vector<16x128xf32>
    %c0_18 = arith.constant 0 : index
    %c0_19 = arith.constant 0 : index
    %18 = vector.load %arg10[%c0_18, %c0_19] : memref<1x128xf32, #tpu.memory_space<vmem>>, vector<1x128xf32>
    %19 = vector.broadcast %18 : vector<1x128xf32> to vector<16x128xf32>
    %20 = arith.addf %17, %19 : vector<16x128xf32>
    %c0_20 = arith.constant 0 : index
    %c0_21 = arith.constant 0 : index
    %21 = vector.load %arg11[%c0_20, %c0_21] : memref<16x128xf32, #tpu.memory_space<vmem>>, vector<16x128xf32>
    tpu.vector_store %arg11[%c0_20, %c0_21], %20 {strides = array<i32>} : memref<16x128xf32, #tpu.memory_space<vmem>>, vector<16x128xf32>,
    return
  }
  func.func @transform_0(%arg0: i32) -> i32 {
    %c0_i32 = arith.constant 0 : i32
    %c0_i32_0 = arith.constant 0 : i32
    return %c0_i32 : i32
  }
  func.func @transform_1(%arg0: i32) -> (i32, i32) {
    %c0_i32 = arith.constant 0 : i32
    %c0_i32_0 = arith.constant 0 : i32
    return %arg0, %c0_i32 : i32, i32
  }
  func.func @transform_2(%arg0: i32) -> (i32, i32) {
    %c0_i32 = arith.constant 0 : i32
    %c0_i32_0 = arith.constant 0 : i32
    return %arg0, %c0_i32 : i32, i32
  }
  func.func @transform_3(%arg0: i32) -> (i32, i32) {
    %c0_i32 = arith.constant 0 : i32
    %c0_i32_0 = arith.constant 0 : i32
    %c0_i32_1 = arith.constant 0 : i32
    return %c0_i32, %c0_i32_0 : i32, i32
  }
  func.func @transform_4(%arg0: i32) -> (i32, i32) {
    %c0_i32 = arith.constant 0 : i32
    %c0_i32_0 = arith.constant 0 : i32
    %c0_i32_1 = arith.constant 0 : i32
    return %c0_i32, %c0_i32_0 : i32, i32
  }
  func.func @transform_5(%arg0: i32) -> (i32, i32) {
    %c0_i32 = arith.constant 0 : i32
    %c0_i32_0 = arith.constant 0 : i32
    %c0_i32_1 = arith.constant 0 : i32
    return %c0_i32, %c0_i32_0 : i32, i32
  }
  func.func @transform_6(%arg0: i32) -> (i32, i32) {
    %c0_i32 = arith.constant 0 : i32
    %c0_i32_0 = arith.constant 0 : i32
    %c0_i32_1 = arith.constant 0 : i32
    return %c0_i32, %c0_i32_0 : i32, i32
  }
  func.func @transform_7(%arg0: i32) -> (i32, i32) {
    %c0_i32 = arith.constant 0 : i32
    %c0_i32_0 = arith.constant 0 : i32
    %c0_i32_1 = arith.constant 0 : i32
    return %c0_i32, %c0_i32_0 : i32, i32
  }
  func.func @transform_8(%arg0: i32) -> (i32, i32) {
    %c0_i32 = arith.constant 0 : i32
    %c0_i32_0 = arith.constant 0 : i32
    %c0_i32_1 = arith.constant 0 : i32
    return %c0_i32, %c0_i32_0 : i32, i32
  }
  func.func @transform_9(%arg0: i32) -> (i32, i32) {
    %c0_i32 = arith.constant 0 : i32
    %c0_i32_0 = arith.constant 0 : i32
    %c0_i32_1 = arith.constant 0 : i32
    return %c0_i32, %c0_i32_0 : i32, i32
  }
  func.func @transform_10(%arg0: i32) -> (i32, i32) {
    %c0_i32 = arith.constant 0 : i32
    %c0_i32_0 = arith.constant 0 : i32
    return %arg0, %c0_i32 : i32, i32
  }
}

</mosaic_0001>

<llo_original>
// kernel: tpu_custom_call.1
$region0: #{tpu_custom_call.1}
  #allocation0 [shape = 'u32[]', space=smem, size = 0x4, offset = 0x4, fixed_abs, tag = 'smem constant byte address 0x4 - core index']
  #allocation1 [shape = 'u32[72,128]{1,0:T(1,128)}', space=vmem, size = 0x9000, scoped, tag = 'internal scratch']
  #allocation2 [shape = 's32[1]{0:T(128)S(6)}', space=smem, size = 0x200, scoped, tag = 'scoped memory for tpu_custom_call.1']
  %s0 = inlined_call_operand.<no memory space> [shape: s32[1], index: 0, kind: input, shape index: {}]
  %s1 = inlined_call_operand.vmem [shape: f32[16,64], index: 1, kind: input, shape index: {}]
  %s2 = inlined_call_operand.vmem [shape: f32[16,16], index: 2, kind: input, shape index: {}]
  %s3 = inlined_call_operand.vmem [shape: f32[16,16], index: 3, kind: input, shape index: {}]
  %s4 = inlined_call_operand.vmem [shape: f32[1,16], index: 4, kind: input, shape index: {}]
  %s5 = inlined_call_operand.vmem [shape: f32[64,32], index: 5, kind: input, shape index: {}]
  %s6 = inlined_call_operand.vmem [shape: f32[16,32], index: 6, kind: input, shape index: {}]
  %s7 = inlined_call_operand.vmem [shape: f32[1,32], index: 7, kind: input, shape index: {}]
  %s8 = inlined_call_operand.vmem [shape: f32[32,128], index: 8, kind: input, shape index: {}]
  %s9 = inlined_call_operand.vmem [shape: f32[1,128], index: 9, kind: input, shape index: {}]
  %s10 = inlined_call_operand.hbm [shape: f32[16,128], index: 10, kind: output, shape index: {}]
  %s11 = sld [smem:[#allocation0]]
  $region50: #{tpu_custom_call.1} parent=0
    _
  %s13 = ssub.s32 1, %s11
  %s14 = scalar_select 0, %s13, %s11
  %15 = sst [smem:[#allocation2]] %s0
  $region1: #{tpu_custom_call.1} parent=0
    #allocation3 [shape = 'u8[8192]{0}', space=vmem, size = 0x2000, scoped, tag = 'output window, operand 0, single buffered']
    #allocation4 [shape = 's32[1]{0}', space=sflag, size = 0x4, scoped, tag = 'scoped memory for tpu_custom_call.1']
    %16 = vsyncpa [#allocation4], 0
    // Predicated region
    $region2: #{tpu_custom_call.1} parent=1 // pred_check
      _
    $region3: #{tpu_custom_call.1} parent=1 // pred_check_branch
      %18 = sbr.rel (0) target = $region5
    $region4: #{tpu_custom_call.1} parent=1 // pred_region
      _
    $region5: #{tpu_custom_call.1} parent=1 // pred_fallthru
      _
    // Predicated region
    $region6: #{tpu_custom_call.1} parent=1 // pred_check
      _
    $region7: #{tpu_custom_call.1} parent=1 // pred_check_branch
      %20 = sbr.rel (0) target = $region9
    $region8: #{tpu_custom_call.1} parent=1 // pred_region
      _
    $region9: #{tpu_custom_call.1} parent=1 // pred_fallthru
      _
    // Predicated region
    $region10: #{tpu_custom_call.1} parent=1 // pred_check
      _
    $region11: #{tpu_custom_call.1} parent=1 // pred_check_branch
      %22 = sbr.rel (0) target = $region13
    $region12: #{tpu_custom_call.1} parent=1 // pred_region
      _
    $region13: #{tpu_custom_call.1} parent=1 // pred_fallthru
      _
    // Predicated region
    $region14: #{tpu_custom_call.1} parent=1 // pred_check
      _
    $region15: #{tpu_custom_call.1} parent=1 // pred_check_branch
      %24 = sbr.rel (0) target = $region17
    $region16: #{tpu_custom_call.1} parent=1 // pred_region
      _
    $region17: #{tpu_custom_call.1} parent=1 // pred_fallthru
      _
    // Predicated region
    $region18: #{tpu_custom_call.1} parent=1 // pred_check
      _
    $region19: #{tpu_custom_call.1} parent=1 // pred_check_branch
      %26 = sbr.rel (0) target = $region21
    $region20: #{tpu_custom_call.1} parent=1 // pred_region
      _
    $region21: #{tpu_custom_call.1} parent=1 // pred_fallthru
      _
    // Predicated region
    $region22: #{tpu_custom_call.1} parent=1 // pred_check
      _
    $region23: #{tpu_custom_call.1} parent=1 // pred_check_branch
      %28 = sbr.rel (0) target = $region25
    $region24: #{tpu_custom_call.1} parent=1 // pred_region
      _
    $region25: #{tpu_custom_call.1} parent=1 // pred_fallthru
      _
    // Predicated region
    $region26: #{tpu_custom_call.1} parent=1 // pred_check
      _
    $region27: #{tpu_custom_call.1} parent=1 // pred_check_branch
      %30 = sbr.rel (0) target = $region29
    $region28: #{tpu_custom_call.1} parent=1 // pred_region
      _
    $region29: #{tpu_custom_call.1} parent=1 // pred_fallthru
      _
    // Predicated region
    $region30: #{tpu_custom_call.1} parent=1 // pred_check
      _
    $region31: #{tpu_custom_call.1} parent=1 // pred_check_branch
      %32 = sbr.rel (0) target = $region33
    $region32: #{tpu_custom_call.1} parent=1 // pred_region
      _
    $region33: #{tpu_custom_call.1} parent=1 // pred_fallthru
      _
    // Predicated region
    $region34: #{tpu_custom_call.1} parent=1 // pred_check
      _
    $region35: #{tpu_custom_call.1} parent=1 // pred_check_branch
      %34 = sbr.rel (0) target = $region37
    $region36: #{tpu_custom_call.1} parent=1 // pred_region
      _
    $region37: #{tpu_custom_call.1} parent=1 // pred_fallthru
      _
    // Predicated region
    $region38: #{tpu_custom_call.1} parent=1 // pred_check
      _
    $region39: #{tpu_custom_call.1} parent=1 // pred_check_branch
      %36 = sbr.rel (0) target = $region41
    $region40: #{tpu_custom_call.1} parent=1 // pred_region
      _
    $region41: #{tpu_custom_call.1} parent=1 // pred_fallthru
      _
    %v37 = vld [vmem:[%s2] sm:$0xff]
    %v38 = vld [vmem:[%s2 + $0x8] sm:$0xff]
    %v39 = vld [vmem:[%s3] sm:$0xff]
    %v40 = vld [vmem:[%s3 + $0x8] sm:$0xff]
    %v41 = vld [vmem:[%s4] sm:$0x1]
    %v43 = vperm.slane %v41, 0
    %vm45 = vcmask 130048
    %v47 = vsel %vm45, %v37, 0
    %v50 = vsel %vm45, %v38, 0
    %52 = vmatpush.msra.mxu0 0.0
    %53 = vmatpush.msra.mxu0 0.0
    %54 = vmatpush.msra.mxu0 0.0
    %55 = vmatpush.msra.mxu0 0.0
    %56 = vmatpush.msra.mxu0 0.0
    %57 = vmatpush.msra.mxu0 0.0
    %58 = vmatpush.msra.mxu0 0.0
    %59 = vmatpush.msra.mxu0 0.0
    %60 = vmatpush.msra.mxu0 0.0
    %61 = vmatpush.msra.mxu0 0.0
    %62 = vmatpush.msra.mxu0 0.0
    %63 = vmatpush.msra.mxu0 0.0
    %64 = vmatpush.msra.mxu0 0.0
    %65 = vmatpush.msra.mxu0 0.0
    %66 = vmatpush.msra.mxu0 %v40
    %67 = vmatpush.msra.mxu0 %v39
    %68 = vmatmul.f32.gmra.mxu0 %v47
    %v69 = vpop.f32.mrf.mxu0
    %v70 = vadd.f32 %v43, %v69
    %71 = vmatmul.f32.gmra.mxu0 %v50
    %v72 = vpop.f32.mrf.mxu0
    %v73 = vadd.f32 %v43, %v72
    %74 = vdwg.mxu0
    %v75 = vld [vmem:[%s1] sm:$0xff]
    %v76 = vld [vmem:[%s1 + $0x8] sm:$0xff]
    %v77 = vld [vmem:[%s5] sm:$0xff]
    %v78 = vld [vmem:[%s5 + $0x8] sm:$0xff]
    %v79 = vld [vmem:[%s5 + $0x10] sm:$0xff]
    %v80 = vld [vmem:[%s5 + $0x18] sm:$0xff]
    %v81 = vld [vmem:[%s5 + $0x20] sm:$0xff]
    %v82 = vld [vmem:[%s5 + $0x28] sm:$0xff]
    %v83 = vld [vmem:[%s5 + $0x30] sm:$0xff]
    %v84 = vld [vmem:[%s5 + $0x38] sm:$0xff]
    %v85 = vld [vmem:[%s6] sm:$0xff]
    %v86 = vld [vmem:[%s6 + $0x8] sm:$0xff]
    %v88 = vsel %vm45, %v70, 0
    %v91 = vsel %vm45, %v73, 0
    %93 = vmatpush.msra.mxu0 0.0
    %94 = vmatpush.msra.mxu0 0.0
    %95 = vmatpush.msra.mxu0 0.0
    %96 = vmatpush.msra.mxu0 0.0
    %97 = vmatpush.msra.mxu0 0.0
    %98 = vmatpush.msra.mxu0 0.0
    %99 = vmatpush.msra.mxu0 0.0
    %100 = vmatpush.msra.mxu0 0.0
    %101 = vmatpush.msra.mxu0 0.0
    %102 = vmatpush.msra.mxu0 0.0
    %103 = vmatpush.msra.mxu0 0.0
    %104 = vmatpush.msra.mxu0 0.0
    %105 = vmatpush.msra.mxu0 0.0
    %106 = vmatpush.msra.mxu0 0.0
    %107 = vmatpush.msra.mxu0 %v86
    %108 = vmatpush.msra.mxu0 %v85
    %109 = vmatmul.f32.gmra.mxu0 %v88
    %v110 = vpop.f32.mrf.mxu0
    %v111 = vadd.f32 0.0, %v110
    %112 = vmatmul.f32.gmra.mxu0 %v91
    %v113 = vpop.f32.mrf.mxu0
    %v114 = vadd.f32 0.0, %v113
    %115 = vdwg.mxu0
    %vm116 = vcmask 523264
    %v118 = vsel %vm116, %v75, 0
    %v121 = vsel %vm116, %v76, 0
    %123 = vmatpush.msra.mxu0 0.0
    %124 = vmatpush.msra.mxu0 0.0
    %125 = vmatpush.msra.mxu0 0.0
    %126 = vmatpush.msra.mxu0 0.0
    %127 = vmatpush.msra.mxu0 0.0
    %128 = vmatpush.msra.mxu0 0.0
    %129 = vmatpush.msra.mxu0 0.0
    %130 = vmatpush.msra.mxu0 0.0
    %131 = vmatpush.msra.mxu0 %v84
    %132 = vmatpush.msra.mxu0 %v83
    %133 = vmatpush.msra.mxu0 %v82
    %134 = vmatpush.msra.mxu0 %v81
    %135 = vmatpush.msra.mxu0 %v80
    %136 = vmatpush.msra.mxu0 %v79
    %137 = vmatpush.msra.mxu0 %v78
    %138 = vmatpush.msra.mxu0 %v77
    %139 = vmatmul.f32.gmra.mxu0 %v118
    %v140 = vpop.f32.mrf.mxu0
    %v141 = vadd.f32 %v111, %v140
    %142 = vmatmul.f32.gmra.mxu0 %v121
    %v143 = vpop.f32.mrf.mxu0
    %v144 = vadd.f32 %v114, %v143
    %145 = vdwg.mxu0
    %v146 = vld [vmem:[%s7] sm:$0x1]
    %v148 = vperm.slane %v146, 0
    %v150 = vadd.f32 %v141, %v148
    %v151 = vadd.f32 %v144, %v148
    %v152 = vtanh.pop %v150
    %v153 = vtanh.pop %v151
    %v154 = vld [vmem:[%s8] sm:$0xff]
    %v155 = vld [vmem:[%s8 + $0x8] sm:$0xff]
    %v156 = vld [vmem:[%s8 + $0x10] sm:$0xff]
    %v157 = vld [vmem:[%s8 + $0x18] sm:$0xff]
    %v158 = vld [vmem:[%s9] sm:$0x1]
    %v160 = vperm.slane %v158, 0
    %vm162 = vcmask 261120
    %v164 = vsel %vm162, %v152, 0
    %v167 = vsel %vm162, %v153, 0
    %169 = vmatpush.msra.mxu0 0.0
    %170 = vmatpush.msra.mxu0 0.0
    %171 = vmatpush.msra.mxu0 0.0
    %172 = vmatpush.msra.mxu0 0.0
    %173 = vmatpush.msra.mxu0 0.0
    %174 = vmatpush.msra.mxu0 0.0
    %175 = vmatpush.msra.mxu0 0.0
    %176 = vmatpush.msra.mxu0 0.0
    %177 = vmatpush.msra.mxu0 0.0
    %178 = vmatpush.msra.mxu0 0.0
    %179 = vmatpush.msra.mxu0 0.0
    %180 = vmatpush.msra.mxu0 0.0
    %181 = vmatpush.msra.mxu0 %v157
    %182 = vmatpush.msra.mxu0 %v156
    %183 = vmatpush.msra.mxu0 %v155
    %184 = vmatpush.msra.mxu0 %v154
    %185 = vmatmul.f32.gmra.mxu0 %v164
    %v186 = vpop.f32.mrf.mxu0
    %v187 = vadd.f32 %v160, %v186
    %188 = vmatmul.f32.gmra.mxu0 %v167
    %v189 = vpop.f32.mrf.mxu0
    %v190 = vadd.f32 %v160, %v189
    %191 = vdwg.mxu0
    %192 = vst [vmem:[#allocation3] sm:$0xff] %v187
    %193 = vst [vmem:[#allocation3 + $0x8] sm:$0xff] %v190
    // Predicated region
    $region42: #{tpu_custom_call.1} parent=1 // pred_check
      _
    $region43: #{tpu_custom_call.1} parent=1 // pred_check_branch
      %195 = sbr.rel (0) target = $region45
    $region44: #{tpu_custom_call.1} parent=1 // pred_region
      %197 = vsyncadd [#allocation4], 0
      %s198 = sshll.u32 [#allocation3], 4
      %s199 = int_to_ptr.vmem [resolvable:$true] %s198
      %s200 = sshll.u32 %s10, 4
      %s201 = int_to_ptr.hbm [resolvable:$true] %s200
      %206 = dma.vmem_to_hbm [thread:$0]  %s199, 256, %s201, [#allocation4], 128, 128, 8
    $region45: #{tpu_custom_call.1} parent=1 // pred_fallthru
      _
    // Predicated region
    $region46: #{tpu_custom_call.1} parent=1 // pred_check
      _
    $region47: #{tpu_custom_call.1} parent=1 // pred_check_branch
      %208 = sbr.rel (0) target = $region49
    $region48: #{tpu_custom_call.1} parent=1 // pred_region
      %210 = dma.done [#allocation4], 256
    $region49: #{tpu_custom_call.1} parent=1 // pred_fallthru
      _
    %211 = vsyncpa [#allocation4], 1

</llo_original>
